<compile_context>
chip_gen: v6e
topology: v6e:2x2x1
jax: 0.10.0
libtpu: 0.0.40
codegen_flags: <defaults>
</compile_context>

<pallas_src>
import jax
import jax.numpy as jnp
from jax.experimental import pallas as pl
from jax.experimental.pallas import tpu as pltpu

_BN_EPS = 1e-5  # nn.BatchNorm1d default


# ---------------------------------------------------------------------------
# Kernel 1: self-attention (softmax over the query axis, dim=1 in the module)
#           + residual + per-batch BatchNorm1 partial statistics.
# ---------------------------------------------------------------------------
def _make_attn_kernel(kv_block: int):
    def kernel(x_ref, r1_ref, stats_ref, acc_ref):
        # grid = (batch, num_kv_tiles); batch is "parallel", kv is "arbitrary".
        kv = pl.program_id(1)

        @pl.when(kv == 0)
        def _init():
            acc_ref[...] = jnp.zeros_like(acc_ref)

        x = x_ref[0]                                     # (S, H) f32 -- all queries
        hdim = x.shape[-1]
        scale = float(hdim) ** -0.5

        start = pl.multiple_of(kv * kv_block, kv_block)
        xk = x_ref[0, pl.ds(start, kv_block), :]         # (kv_block, H) keys == values

        # bf16 MXU operands, f32 accumulation; 1/sqrt(H) folded into the Q cast.
        q16 = (x * scale).astype(jnp.bfloat16)
        k16 = xk.astype(jnp.bfloat16)
        scores = jax.lax.dot_general(                    # (S, kv_block): scores[i, j]
            q16, k16, (((1,), (1,)), ((), ())),
            preferred_element_type=jnp.float32)

        # Module softmax is over dim=1 == the *query* axis i, i.e. per key column
        # j.  Each key column is complete inside its tile, so tiles accumulate.
        m = jnp.max(scores, axis=0, keepdims=True)       # (1, kv_block)
        e = jnp.exp(scores - m)                          # f32
        inv = pl.reciprocal(jnp.sum(e, axis=0, keepdims=True), approx=True)
        # Fold the denominator into the bf16 cast of the weights (no divides, no
        # extra pass over the tile); for S >> H folding into the V rows instead
        # (kv_block*H multiplies) is the cheaper micro-variant.
        p16 = (e * inv).astype(jnp.bfloat16)
        acc_ref[...] += jnp.dot(p16, xk.astype(jnp.bfloat16),
                                preferred_element_type=jnp.float32)

        @pl.when(kv == pl.num_programs(1) - 1)
        def _finalize():
            r1 = acc_ref[...] + x                        # residual, f32
            r1_ref[0] = r1
            # Single-pass BN statistics: per-batch sum and sum-of-squares.
            stats_ref[0, 0:1, :] = jnp.sum(r1, axis=0, keepdims=True)
            stats_ref[0, 1:2, :] = jnp.sum(r1 * r1, axis=0, keepdims=True)

    return kernel


# ---------------------------------------------------------------------------
# Kernel 2: BN1 normalize -> Linear/ReLU stack -> residual -> BN2, on the
#           flattened (B*S, H) slab (batch folded into the MXU M dimension).
# ---------------------------------------------------------------------------
def _make_mlp_kernel(num_lin: int):
    def kernel(r1_ref, mu_ref, inv_ref, *rest):
        w_refs = rest[:num_lin]                          # (H, H) bf16, (in, out) layout
        b_refs = rest[num_lin:2 * num_lin]               # (1, H) f32
        o_ref = rest[2 * num_lin]

        # BatchNorm1d(idim): normalize with the globally reduced statistics.
        a = (r1_ref[...] - mu_ref[...]) * inv_ref[...]   # (M, H) f32

        h = a
        for w_ref, b_ref in zip(w_refs, b_refs):
            h = jnp.dot(h.astype(jnp.bfloat16), w_ref[...],
                        preferred_element_type=jnp.float32)
            h = jnp.maximum(h + b_ref[...], 0.0)

        r2 = h + a                                       # residual with the BN1 output
        # BatchNorm1d(hdim): single-pass biased batch statistics over M = B*S.
        n = r2.shape[0]
        mu = jnp.sum(r2, axis=0, keepdims=True) * (1.0 / n)
        ex2 = jnp.sum(r2 * r2, axis=0, keepdims=True) * (1.0 / n)
        var = ex2 - mu * mu
        o_ref[...] = ((r2 - mu) * jax.lax.rsqrt(var + _BN_EPS)).astype(o_ref.dtype)

    return kernel


def attention_encoder_block(inputs, weights, biases, *, kv_block=512):
    """inputs: (S, B, H) f32.  weights: list of (H, H) matrices in (in, out)
    layout (i.e. PyTorch lin.weight.T).  biases: list of (H,).  Returns (S, B, H)."""
    S, B, H = inputs.shape
    num_lin = len(weights)
    if kv_block is None or kv_block <= 0 or S % kv_block != 0:
        kv_block = S
    nkv = S // kv_block

    # One batch-major layout transpose (the module itself does inputs.permute(1,0,2)).
    # TODO(synk): reading (S, 1, H) blocks straight from the (S, B, H) array would
    # drop this HBM pass, but a size-1 sublane block violates the (8,128) rule.
    x_bsh = jnp.transpose(inputs, (1, 0, 2))             # (B, S, H)

    r1, stats = pl.pallas_call(
        _make_attn_kernel(kv_block),
        out_shape=(jax.ShapeDtypeStruct((B, S, H), jnp.float32),
                   jax.ShapeDtypeStruct((B, 2, H), jnp.float32)),
        grid=(B, nkv),
        in_specs=[pl.BlockSpec((1, S, H), lambda b, k: (b, 0, 0))],
        out_specs=(pl.BlockSpec((1, S, H), lambda b, k: (b, 0, 0)),
                   pl.BlockSpec((1, 2, H), lambda b, k: (b, 0, 0))),
        scratch_shapes=[pltpu.VMEM((S, H), jnp.float32)],
        compiler_params=pltpu.CompilerParams(
            dimension_semantics=("parallel", "arbitrary"),
            vmem_limit_bytes=48 * 1024 * 1024),
    )(x_bsh)

    # Finalize BN1 statistics: a tiny (B, 2, H) -> (2, H) reduction in XLA.
    count = float(B * S)
    s = jnp.sum(stats, axis=0)                           # (2, H)
    mu1 = s[0:1] / count                                 # (1, H)
    var1 = s[1:2] / count - mu1 * mu1                    # biased batch variance
    inv1 = jax.lax.rsqrt(var1 + _BN_EPS)

    M = B * S
    r1_flat = r1.reshape(M, H)                           # contiguous -- free view
    w16 = [w.astype(jnp.bfloat16) for w in weights]      # halves weight DMA traffic
    b2d = [b.reshape(1, H).astype(jnp.float32) for b in biases]

    in_specs = (
        [pl.BlockSpec((M, H), lambda i: (0, 0)),
         pl.BlockSpec((1, H), lambda i: (0, 0)),
         pl.BlockSpec((1, H), lambda i: (0, 0))]
        + [pl.BlockSpec((H, H), lambda i: (0, 0)) for _ in w16]
        + [pl.BlockSpec((1, H), lambda i: (0, 0)) for _ in b2d]
    )

    # TODO(synk): BN2 needs global stats of its own output, so this call keeps the
    # (B*S, H) slab resident in a single step; for very large B*S split it into a
    # gridded stats pass + normalize pass instead.
    out_flat = pl.pallas_call(
        _make_mlp_kernel(num_lin),
        out_shape=jax.ShapeDtypeStruct((M, H), inputs.dtype),
        grid=(1,),
        in_specs=in_specs,
        out_specs=pl.BlockSpec((M, H), lambda i: (0, 0)),
        compiler_params=pltpu.CompilerParams(
            dimension_semantics=("arbitrary",),
            vmem_limit_bytes=48 * 1024 * 1024),
    )(r1_flat, mu1, inv1, *w16, *b2d)

    return jnp.transpose(out_flat.reshape(B, S, H), (1, 0, 2))


def _reference(inputs, weights, biases):
    """Pure-JAX f32 mirror of PyTorch AttentionEncoderBlock.forward (training mode)."""
    S, B, H = inputs.shape
    scale = float(H) ** -0.5
    xb = jnp.transpose(inputs, (1, 0, 2))                # (B, S, H)
    scores = jnp.einsum("bid,bjd->bij", xb, xb) * scale
    w = jax.nn.softmax(scores, axis=1)                   # dim=1, as in the module
    attn = jnp.transpose(jnp.einsum("bij,bjd->bid", w, xb), (1, 0, 2))

    def bn(t):  # BatchNorm1d training mode: biased batch stats, gamma=1, beta=0
        mu = jnp.mean(t, axis=(0, 1), keepdims=True)
        var = jnp.mean((t - mu) ** 2, axis=(0, 1), keepdims=True)
        return (t - mu) * jax.lax.rsqrt(var + _BN_EPS)

    a = bn(attn + inputs)
    h = a
    for w_, b_ in zip(weights, biases):
        h = jnp.maximum(h @ w_ + b_, 0.0)
    return bn(h + a)


if __name__ == "__main__":
    # Small but lane-dense shapes: H=128 is the smallest full-lane feature width;
    # kv_block=8 gives a 2-step key axis so the accumulator path is exercised.
    S, B, H, NUM_LIN = 16, 2, 128, 2
    key = jax.random.PRNGKey(0)
    kx, kw, kb = jax.random.split(key, 3)

    x = jax.random.normal(kx, (S, B, H), dtype=jnp.float32)
    wkeys = jax.random.split(kw, NUM_LIN)
    bkeys = jax.random.split(kb, NUM_LIN)
    # Linear params in (in, out) layout (i.e. PyTorch lin.weight.T): kaiming-style
    # weight scale, default U(-1/sqrt(fan_in), 1/sqrt(fan_in)) bias.
    weights = [jax.random.normal(k_, (H, H), jnp.float32) * (2.0 / H) ** 0.5
               for k_ in wkeys]
    biases = [jax.random.uniform(k_, (H,), jnp.float32,
                                 -1.0 / (H ** 0.5), 1.0 / (H ** 0.5))
              for k_ in bkeys]

    out = attention_encoder_block(x, weights, biases, kv_block=8)
    out = jax.block_until_ready(out)

    ref = _reference(x, weights, biases)
    assert out.shape == (S, B, H)
    # bf16 MXU operands + the approximate EUP reciprocal => looser tolerance than
    # a pure-f32 comparison; structural bugs would still show up as O(1) errors.
    assert jnp.allclose(out, ref, atol=1e-1, rtol=1e-1), "mismatch vs reference"
    print("KERNEL_OK")
</pallas_src>

<mosaic_0001>
module attributes {stable_mosaic.version = 11 : i64} {
  func.func @kernel(%arg0: i32, %arg1: i32, %arg2: memref<1x16x128xf32, #tpu.memory_space<vmem>>, %arg3: memref<1x16x128xf32, #tpu.memory_space<vmem>>, %arg4: memref<1x2x128xf32, #tpu.memory_space<vmem>>, %arg5: memref<16x128xf32, #tpu.memory_space<vmem>>) attributes {dimension_semantics = [#tpu.dimension_semantics<parallel>, #tpu.dimension_semantics<arbitrary>], iteration_bounds = array<i64: 2, 2>, scalar_prefetch = 0 : i64, scratch_operands = 1 : i64, tpu.core_type = #tpu.core_type<tc>, window_params = [{transform_indices = @transform_0, window_bounds = array<i64: 1, 16, 128>}, {transform_indices = @transform_1, window_bounds = array<i64: 1, 16, 128>}, {transform_indices = @transform_2, window_bounds = array<i64: 1, 2, 128>}]} {
    %c0_i32 = arith.constant 0 : i32
    %0 = arith.cmpi eq, %arg1, %c0_i32 : i32
    %1 = arith.extui %0 : i1 to i32
    %c0_i32_0 = arith.constant 0 : i32
    %2 = arith.cmpi ne, %1, %c0_i32_0 : i32
    scf.if %2 {
      %cst_14 = arith.constant 0.000000e+00 : f32
      %34 = vector.broadcast %cst_14 : f32 to vector<16x128xf32>
      %c0_15 = arith.constant 0 : index
      %c0_16 = arith.constant 0 : index
      %35 = vector.load %arg5[%c0_15, %c0_16] : memref<16x128xf32, #tpu.memory_space<vmem>>, vector<16x128xf32>
      tpu.vector_store %arg5[%c0_15, %c0_16], %34 {strides = array<i32>} : memref<16x128xf32, #tpu.memory_space<vmem>>, vector<16x128xf32>,
    } else {
    }
    %c0 = arith.constant 0 : index
    %c0_1 = arith.constant 0 : index
    %c0_2 = arith.constant 0 : index
    %3 = vector.load %arg2[%c0, %c0_1, %c0_2] : memref<1x16x128xf32, #tpu.memory_space<vmem>>, vector<1x16x128xf32>
    %4 = vector.shape_cast %3 : vector<1x16x128xf32> to vector<16x128xf32>
    %c8_i32 = arith.constant 8 : i32
    %5 = arith.muli %arg1, %c8_i32 : i32
    %6 = tpu.assume_multiple %5, 8 : i32
    %c0_3 = arith.constant 0 : index
    %7 = arith.index_cast %6 : i32 to index
    %c0_4 = arith.constant 0 : index
    %8 = vector.load %arg2[%c0_3, %7, %c0_4] : memref<1x16x128xf32, #tpu.memory_space<vmem>>, vector<1x8x128xf32>
    %9 = vector.shape_cast %8 : vector<1x8x128xf32> to vector<8x128xf32>
    %cst = arith.constant 0.0883883461 : f32
    %10 = vector.broadcast %cst : f32 to vector<16x128xf32>
    %11 = arith.mulf %4, %10 : vector<16x128xf32>
    %12 = arith.truncf %11 : vector<16x128xf32> to vector<16x128xbf16>
    %13 = arith.truncf %9 : vector<8x128xf32> to vector<8x128xbf16>
    %cst_5 = arith.constant dense<0.000000e+00> : vector<16x8xf32>
    %14 = tpu.matmul %12, %13, %cst_5 {dimension_numbers = #tpu.dot_dimension_numbers<[1], [1], [0], [0], [0, 0, 1, 0], [], []>} : vector<16x128xbf16>, vector<8x128xbf16>, vector<16x8xf32> -> vector<16x8xf32>
    %cst_6 = arith.constant dense<0xFF800000> : vector<8xf32>
    %15 = vector.multi_reduction <maximumf>, %14, %cst_6 [0] : vector<16x8xf32> to vector<8xf32>
    %16 = vector.shape_cast %15 : vector<8xf32> to vector<1x8xf32>
    %17 = vector.broadcast %16 : vector<1x8xf32> to vector<16x8xf32>
    %18 = arith.subf %14, %17 : vector<16x8xf32>
    %19 = math.exp %18 : vector<16x8xf32>
    %cst_7 = arith.constant dense<0.000000e+00> : vector<8xf32>
    %20 = vector.multi_reduction <add>, %19, %cst_7 [0] : vector<16x8xf32> to vector<8xf32>
    %21 = vector.shape_cast %20 : vector<8xf32> to vector<1x8xf32>
    %22 = tpu.reciprocal %21 {approx = true} : vector<1x8xf32> -> vector<1x8xf32>
    %23 = vector.broadcast %22 : vector<1x8xf32> to vector<16x8xf32>
    %24 = arith.mulf %19, %23 : vector<16x8xf32>
    %25 = arith.truncf %24 : vector<16x8xf32> to vector<16x8xbf16>
    %c0_8 = arith.constant 0 : index
    %c0_9 = arith.constant 0 : index
    %26 = vector.load %arg5[%c0_8, %c0_9] : memref<16x128xf32, #tpu.memory_space<vmem>>, vector<16x128xf32>
    %27 = arith.truncf %9 : vector<8x128xf32> to vector<8x128xbf16>
    %cst_10 = arith.constant dense<0.000000e+00> : vector<16x128xf32>
    %28 = tpu.matmul %25, %27, %cst_10 {dimension_numbers = #tpu.dot_dimension_numbers<[1], [0], [0], [1], [0, 0, 1, 1], [], []>} : vector<16x8xbf16>, vector<8x128xbf16>, vector<16x128xf32> -> vector<16x128xf32>
    %29 = arith.addf %26, %28 : vector<16x128xf32>
    %c0_11 = arith.constant 0 : index
    %c0_12 = arith.constant 0 : index
    %30 = vector.load %arg5[%c0_11, %c0_12] : memref<16x128xf32, #tpu.memory_space<vmem>>, vector<16x128xf32>
    tpu.vector_store %arg5[%c0_11, %c0_12], %29 {strides = array<i32>} : memref<16x128xf32, #tpu.memory_space<vmem>>, vector<16x128xf32>,
    %c1_i32 = arith.constant 1 : i32
    %31 = arith.cmpi eq, %arg1, %c1_i32 : i32
    %32 = arith.extui %31 : i1 to i32
    %c0_i32_13 = arith.constant 0 : i32
    %33 = arith.cmpi ne, %32, %c0_i32_13 : i32
    scf.if %33 {
      %c0_14 = arith.constant 0 : index
      %c0_15 = arith.constant 0 : index
      %34 = vector.load %arg5[%c0_14, %c0_15] : memref<16x128xf32, #tpu.memory_space<vmem>>, vector<16x128xf32>
      %35 = arith.addf %34, %4 : vector<16x128xf32>
      %c0_16 = arith.constant 0 : index
      %c0_17 = arith.constant 0 : index
      %c0_18 = arith.constant 0 : index
      %36 = vector.load %arg3[%c0_16, %c0_17, %c0_18] : memref<1x16x128xf32, #tpu.memory_space<vmem>>, vector<1x16x128xf32>
      %37 = vector.shape_cast %36 : vector<1x16x128xf32> to vector<16x128xf32>
      %38 = vector.shape_cast %35 : vector<16x128xf32> to vector<1x16x128xf32>
      tpu.vector_store %arg3[%c0_16, %c0_17, %c0_18], %38 {strides = array<i32>} : memref<1x16x128xf32, #tpu.memory_space<vmem>>, vector<1x16x128xf32>,
      %cst_19 = arith.constant dense<0.000000e+00> : vector<128xf32>
      %39 = vector.multi_reduction <add>, %35, %cst_19 [0] : vector<16x128xf32> to vector<128xf32>
      %40 = vector.shape_cast %39 : vector<128xf32> to vector<1x128xf32>
      %c0_20 = arith.constant 0 : index
      %c0_21 = arith.constant 0 : index
      %c0_22 = arith.constant 0 : index
      %41 = vector.load %arg4[%c0_20, %c0_21, %c0_22] : memref<1x2x128xf32, #tpu.memory_space<vmem>>, vector<1x1x128xf32>
      %42 = vector.shape_cast %41 : vector<1x1x128xf32> to vector<1x128xf32>
      %43 = vector.shape_cast %40 : vector<1x128xf32> to vector<1x1x128xf32>
      tpu.vector_store %arg4[%c0_20, %c0_21, %c0_22], %43 {strides = array<i32>} : memref<1x2x128xf32, #tpu.memory_space<vmem>>, vector<1x1x128xf32>,
      %44 = arith.mulf %35, %35 : vector<16x128xf32>
      %cst_23 = arith.constant dense<0.000000e+00> : vector<128xf32>
      %45 = vector.multi_reduction <add>, %44, %cst_23 [0] : vector<16x128xf32> to vector<128xf32>
      %46 = vector.shape_cast %45 : vector<128xf32> to vector<1x128xf32>
      %c0_24 = arith.constant 0 : index
      %c1 = arith.constant 1 : index
      %c0_25 = arith.constant 0 : index
      %47 = vector.load %arg4[%c0_24, %c1, %c0_25] : memref<1x2x128xf32, #tpu.memory_space<vmem>>, vector<1x1x128xf32>
      %48 = vector.shape_cast %47 : vector<1x1x128xf32> to vector<1x128xf32>
      %49 = vector.shape_cast %46 : vector<1x128xf32> to vector<1x1x128xf32>
      tpu.vector_store %arg4[%c0_24, %c1, %c0_25], %49 {strides = array<i32>} : memref<1x2x128xf32, #tpu.memory_space<vmem>>, vector<1x1x128xf32>,
    } else {
    }
    return
  }
  func.func @transform_0(%arg0: i32, %arg1: i32) -> (i32, i32, i32) {
    %c0_i32 = arith.constant 0 : i32
    %c0_i32_0 = arith.constant 0 : i32
    %c0_i32_1 = arith.constant 0 : i32
    return %arg0, %c0_i32, %c0_i32_0 : i32, i32, i32
  }
  func.func @transform_1(%arg0: i32, %arg1: i32) -> (i32, i32, i32) {
    %c0_i32 = arith.constant 0 : i32
    %c0_i32_0 = arith.constant 0 : i32
    %c0_i32_1 = arith.constant 0 : i32
    return %arg0, %c0_i32, %c0_i32_0 : i32, i32, i32
  }
  func.func @transform_2(%arg0: i32, %arg1: i32) -> (i32, i32, i32) {
    %c0_i32 = arith.constant 0 : i32
    %c0_i32_0 = arith.constant 0 : i32
    %c0_i32_1 = arith.constant 0 : i32
    return %arg0, %c0_i32, %c0_i32_0 : i32, i32, i32
  }
}

</mosaic_0001>

<llo_original>
// kernel: tpu_custom_call.1
$region0: #{tpu_custom_call.1}
  #allocation0 [shape = 'u32[]', space=smem, size = 0x4, offset = 0x4, fixed_abs, tag = 'smem constant byte address 0x4 - core index']
  #allocation1 [shape = 'u32[144,128]{1,0:T(1,128)}', space=vmem, size = 0x12000, scoped, tag = 'internal scratch']
  #allocation2 [shape = 'f32[16,128]{1,0:T(8,128)}', space=vmem, size = 0x2000, scoped, tag = 'scratch operand']
  %s0 = inlined_call_operand.hbm [shape: f32[2,16,128], index: 0, kind: input, shape index: {}]
  %s1 = inlined_call_operand.hbm [shape: f32[2,16,128], index: 1, kind: output, shape index: {0}]
  %s2 = inlined_call_operand.hbm [shape: f32[2,2,128], index: 2, kind: output, shape index: {1}]
  %3 = xla_tuple %s1, %s2
  %s4 = sld [smem:[#allocation0]]
  $region57: #{tpu_custom_call.1} parent=0
    _
  %s6 = ssub.s32 1, %s4
  %s7 = scalar_select 0, %s6, %s4
  $region1: #{tpu_custom_call.1} parent=0
    #allocation3 [shape = 'u8[16384]{0}', space=vmem, size = 0x4000, scoped, tag = 'input window, operand 0']
    #allocation4 [shape = 's32[2]{0}', space=sflag, size = 0x8, scoped, tag = 'scoped memory for tpu_custom_call.1']
    #allocation5 [shape = 's32[2]{0}', space=sflag, size = 0x8, scoped, tag = 'scoped memory for tpu_custom_call.1']
    #allocation6 [shape = 'u8[16384]{0}', space=vmem, size = 0x4000, scoped, tag = 'output window, operand 0']
    #allocation7 [shape = 'u8[2048]{0}', space=vmem, size = 0x800, scoped, tag = 'output window, operand 1']
    #allocation8 [shape = 's32[2]{0}', space=sflag, size = 0x8, scoped, tag = 'scoped memory for tpu_custom_call.1']
    %8 = vsyncpa [#allocation4], 0
    %s9 = scalar_lea.sflag [#allocation4], 1
    %10 = vsyncpa %s9, 0
    %11 = vsyncpa [#allocation5], 0
    %s12 = scalar_lea.sflag [#allocation5], 1
    %13 = vsyncpa %s12, 0
    %14 = vsyncpa [#allocation8], 0
    %s15 = scalar_lea.sflag [#allocation8], 1
    %16 = vsyncpa %s15, 0
    loop: start=0, step=1, limit=6
    $region2: #{tpu_custom_call.1} parent=1 // loop_pre_header
      _
    $region3: #{tpu_custom_call.1} parent=1 // loop_header
      %s18 = sphi 0, %s22
      %p19 = scmp.ge.s32.totalorder %s18, 6
      %s25 = sphi 0, %s37
      %s26 = sphi 0, %s33
      %s27 = sphi 0, %s25
      %s28 = sphi 0, %s26
      %s29 = sphi 0, %s27
      %s30 = sphi 0, %s28
      %s40 = sphi 0, %s42
      %s43 = sphi 0, %s40
      %s44 = sphi 0, %s43
      %s60 = sphi 0, %s44
      %s66 = sphi 0, %s68
      %s69 = sphi 0, %s66
      %s70 = sphi 0, %s69
      %s86 = sphi 0, %s70
      %s92 = sphi 0, %s94
      %s95 = sphi 0, %s92
      %s96 = sphi 0, %s95
      %s112 = sphi 0, %s96
    $region4: #{tpu_custom_call.1} parent=1 // loop_header_branch
      %21 = sbr.rel (%p19) target = $region8
    $region5: #{tpu_custom_call.1} parent=1 // loop_body
      %s23 = ssub.s32 %s18, 1
      %s24 = ssub.s32 %s18, 2
      %s31 = sadd.s32 1, %s26
      %p32 = scmp.ge.s32.totalorder %s31, 2
      %s33 = scalar_select %p32, 0, %s31
      %s34 = sadd.s32 1, %s25
      %s35 = scalar_select %p32, %s34, %s25
      %p36 = scmp.ge.s32.totalorder %s35, 2
      %s37 = scalar_select %p36, 0, %s35
      %s38 = ssub.s32 %s25, %s37
      %p39 = scmp.eq.s32.totalorder %s38, 0
      %s41 = sadd.s32 %s40, 1
      %s42 = scalar_select %p39, %s40, %s41
      %p45 = pneg %p39
      %p46 = scmp.eq.s32.totalorder %s18, 3
      %p47 = por %p45, %p46
      %p48 = scmp.ne.s32.totalorder %s40, %s43
      %p49 = scmp.eq.s32.totalorder %s18, 0
      %p50 = por %p48, %p49
      %p51 = scmp.ne.s32.totalorder %s40, %s43
      %p52 = scmp.eq.s32.totalorder %s23, 3
      %p53 = por %p51, %p52
      %p54 = scmp.ne.s32.totalorder %s43, %s44
      %p55 = scmp.eq.s32.totalorder %s23, 0
      %p56 = por %p54, %p55
      %p57 = scmp.ne.s32.totalorder %s43, %s44
      %p58 = scmp.eq.s32.totalorder %s24, 3
      %p59 = por %p57, %p58
      %p61 = scmp.ne.s32.totalorder %s44, %s60
      %p62 = scmp.eq.s32.totalorder %s24, 0
      %p63 = por %p61, %p62
      %s64 = ssub.s32 %s25, %s37
      %p65 = scmp.eq.s32.totalorder %s64, 0
      %s67 = sadd.s32 %s66, 1
      %s68 = scalar_select %p65, %s66, %s67
      %p71 = pneg %p65
      %p72 = scmp.eq.s32.totalorder %s18, 3
      %p73 = por %p71, %p72
      %p74 = scmp.ne.s32.totalorder %s66, %s69
      %p75 = scmp.eq.s32.totalorder %s18, 0
      %p76 = por %p74, %p75
      %p77 = scmp.ne.s32.totalorder %s66, %s69
      %p78 = scmp.eq.s32.totalorder %s23, 3
      %p79 = por %p77, %p78
      %p80 = scmp.ne.s32.totalorder %s69, %s70
      %p81 = scmp.eq.s32.totalorder %s23, 0
      %p82 = por %p80, %p81
      %p83 = scmp.ne.s32.totalorder %s69, %s70
      %p84 = scmp.eq.s32.totalorder %s24, 3
      %p85 = por %p83, %p84
      %p87 = scmp.ne.s32.totalorder %s70, %s86
      %p88 = scmp.eq.s32.totalorder %s24, 0
      %p89 = por %p87, %p88
      %s90 = ssub.s32 %s25, %s37
      %p91 = scmp.eq.s32.totalorder %s90, 0
      %s93 = sadd.s32 %s92, 1
      %s94 = scalar_select %p91, %s92, %s93
      %p97 = pneg %p91
      %p98 = scmp.eq.s32.totalorder %s18, 3
      %p99 = por %p97, %p98
      %p100 = scmp.ne.s32.totalorder %s92, %s95
      %p101 = scmp.eq.s32.totalorder %s18, 0
      %p102 = por %p100, %p101
      %p103 = scmp.ne.s32.totalorder %s92, %s95
      %p104 = scmp.eq.s32.totalorder %s23, 3
      %p105 = por %p103, %p104
      %p106 = scmp.ne.s32.totalorder %s95, %s96
      %p107 = scmp.eq.s32.totalorder %s23, 0
      %p108 = por %p106, %p107
      %p109 = scmp.ne.s32.totalorder %s95, %s96
      %p110 = scmp.eq.s32.totalorder %s24, 3
      %p111 = por %p109, %p110
      %p113 = scmp.ne.s32.totalorder %s96, %s112
      %p114 = scmp.eq.s32.totalorder %s24, 0
      %p115 = por %p113, %p114
      %p116 = scmp.le.s32.totalorder 1, %s18
      %p117 = scmp.lt.s32.totalorder %s18, 5
      %p118 = pnand %p116, %p117
      %p119 = pneg %p118
      // Predicated region
      $region9: #{tpu_custom_call.1} parent=5 // pred_check
        _
      $region10: #{tpu_custom_call.1} parent=5 // pred_check_branch
        %121 = sbr.rel (%p118) target = $region12
      $region11: #{tpu_custom_call.1} parent=5 // pred_region
        %s122 = ssub.s32 %s18, 1
      $region12: #{tpu_custom_call.1} parent=5 // pred_fallthru
        _
      %p123 = scmp.lt.s32.totalorder %s18, 4
      // Predicated region
      $region13: #{tpu_custom_call.1} parent=5 // pred_check
        %p124 = pneg %p123
      $region14: #{tpu_custom_call.1} parent=5 // pred_check_branch
        %126 = sbr.rel (%p124) target = $region16
      $region15: #{tpu_custom_call.1} parent=5 // pred_region
        // Predicated region
        $region17: #{tpu_custom_call.1} parent=15 // pred_check
          %p127 = pneg %p50
        $region18: #{tpu_custom_call.1} parent=15 // pred_check_branch
          %129 = sbr.rel (%p127) target = $region20
        $region19: #{tpu_custom_call.1} parent=15 // pred_region
          %s130 = sand.u32 %s40, 1
          %s131 = scalar_lea.sflag [#allocation4], %s130
          %s132 = sand.u32 %s40, 1
          %s133 = smul.addr %s132, 16
          %s134 = scalar_lea.vmem [#allocation3], %s133
          %s136 = ssub.s32 256, 256
          %137 = vsyncadd %s131, %s136
          %s138 = smul.addr %s25, 2
          %s139 = smul.addr %s138, 128
          %s140 = scalar_lea.hbm %s0, %s139
          %s141 = sshll.u32 %s134, 4
          %s142 = int_to_ptr.vmem [resolvable:$true] %s141
          %147 = dma.hbm_to_vmem [thread:$0]  %s140, 256, %s142, %s131, 128, 128, 8
        $region20: #{tpu_custom_call.1} parent=15 // pred_fallthru
          _
      $region16: #{tpu_custom_call.1} parent=5 // pred_fallthru
        _
      %p148 = scmp.le.s32.totalorder 1, %s18
      %p149 = scmp.lt.s32.totalorder %s18, 5
      %p150 = pnand %p148, %p149
      %p151 = pneg %p150
      // Predicated region
      $region21: #{tpu_custom_call.1} parent=5 // pred_check
        _
      $region22: #{tpu_custom_call.1} parent=5 // pred_check_branch
        %153 = sbr.rel (%p150) target = $region24
      $region23: #{tpu_custom_call.1} parent=5 // pred_region
        %s154 = ssub.s32 %s18, 1
        %s155 = sand.u32 %s43, 1
        %s156 = scalar_lea.sflag [#allocation4], %s155
        %s157 = sand.u32 %s43, 1
        %s158 = smul.addr %s157, 16
        %s159 = scalar_lea.vmem [#allocation3], %s158
        // Predicated region
        $region25: #{tpu_custom_call.1} parent=23 // pred_check
          %p160 = pneg %p56
        $region26: #{tpu_custom_call.1} parent=23 // pred_check_branch
          %162 = sbr.rel (%p160) target = $region28
        $region27: #{tpu_custom_call.1} parent=23 // pred_region
          %163 = dma.done %s156, 256
        $region28: #{tpu_custom_call.1} parent=23 // pred_fallthru
          _
        %s164 = sand.u32 %s43, 1
        %s165 = scalar_lea.sflag [#allocation4], %s164
        %s166 = sand.u32 %s43, 1
        %s167 = smul.addr %s166, 16
        %s168 = scalar_lea.vmem [#allocation3], %s167
        %p169 = pneg %p56
        %p170 = pneg %p53
        %p171 = pneg %p82
        %p172 = pneg %p79
        %s173 = sand.u32 %s69, 1
        %s174 = scalar_lea.sflag [#allocation5], %s173
        %s175 = sand.u32 %s69, 1
        %s176 = smul.addr %s175, 16
        %s177 = scalar_lea.vmem [#allocation6], %s176
        %p178 = pneg %p108
        %p179 = pneg %p105
        %s180 = sand.u32 %s95, 1
        %s181 = scalar_lea.sflag [#allocation8], %s180
        %s182 = sand.u32 %s95, 1
        %s183 = smul.addr %s182, 2
        %s184 = scalar_lea.vmem [#allocation7], %s183
        %p186 = scmp.eq.s32.totalorder %s28, 0
        // Predicated region
        $region29: #{tpu_custom_call.1} parent=23 // pred_check
          %p187 = pneg %p186
        $region30: #{tpu_custom_call.1} parent=23 // pred_check_branch
          %189 = sbr.rel (%p187) target = $region32
        $region31: #{tpu_custom_call.1} parent=23 // pred_region
          %190 = vst [vmem:[#allocation2] sm:$0xff] 0.0
          %191 = vst [vmem:[#allocation2 + $0x8] sm:$0xff] 0.0
        $region32: #{tpu_custom_call.1} parent=23 // pred_fallthru
          _
        %v192 = vld [vmem:[%s159] sm:$0xff]
        %v193 = vld [vmem:[%s159 + $0x8] sm:$0xff]
        %s194 = smul.u32 %s28, 8
        %s195 = scalar_lea.vmem %s159, %s194 [#allocation3]
        %v196 = vld [vmem:[%s195] sm:$0xff]
        %v197 = vmul.f32 %v192, 0.088388346
        %v198 = vmul.f32 %v193, 0.088388346
        %v199 = vpack.c.bf16 %v198, %v197
        %v200 = vpack.c.bf16 %v196, %v196
        %201 = vmatprep.subr.bf16.mxu0 0
        %202 = vmatpush1.bf16.xpose.msra.mxu0 0
        %203 = vmatprep.subr.bf16.mxu0 0
        %204 = vmatpush1.bf16.xpose.msra.mxu0 0
        %205 = vmatprep.subr.bf16.mxu0 0
        %206 = vmatpush1.bf16.xpose.msra.mxu0 0
        %207 = vmatprep.subr.bf16.mxu0 0
        %208 = vmatpush1.bf16.xpose.msra.mxu0 0
        %209 = vmatprep.subr.bf16.mxu0 0
        %210 = vmatpush1.bf16.xpose.msra.mxu0 0
        %211 = vmatprep.subr.bf16.mxu0 0
        %212 = vmatpush1.bf16.xpose.msra.mxu0 0
        %213 = vmatprep.subr.bf16.mxu0 0
        %214 = vmatpush1.bf16.xpose.msra.mxu0 0
        %215 = vmatprep.subr.bf16.mxu0 0
        %216 = vmatpush1.bf16.xpose.msra.mxu0 %v200
        %217 = vmatprep.subr.bf16.mxu0 0
        %218 = vmatpush2.bf16.xpose.msra.mxu0 0
        %219 = vmatprep.subr.bf16.mxu0 0
        %220 = vmatpush2.bf16.xpose.msra.mxu0 0
        %221 = vmatprep.subr.bf16.mxu0 0
        %222 = vmatpush2.bf16.xpose.msra.mxu0 0
        %223 = vmatprep.subr.bf16.mxu0 0
        %224 = vmatpush2.bf16.xpose.msra.mxu0 0
        %225 = vmatprep.subr.bf16.mxu0 0
        %226 = vmatpush2.bf16.xpose.msra.mxu0 0
        %227 = vmatprep.subr.bf16.mxu0 0
        %228 = vmatpush2.bf16.xpose.msra.mxu0 0
        %229 = vmatprep.subr.bf16.mxu0 0
        %230 = vmatpush2.bf16.xpose.msra.mxu0 0
        %231 = vmatprep.subr.bf16.mxu0 0
        %232 = vmatpush2.bf16.xpose.msra.mxu0 0
        %233 = vmatprep.mubr.bf16.mxu0 0
        %234 = vmatmul.mubr.bf16.gmra.mxu0 %v199
        %v235 = vpop.f32.mrf.mxu0
        %v236 = vadd.f32 0.0, %v235
        %v237 = vpop.f32.mrf.mxu0
        %v238 = vpop.f32.mrf.mxu0
        %v239 = vadd.f32 0.0, %v238
        %v240 = vpop.f32.mrf.mxu0
        %241 = vdwg.mxu0
        %vm242 = vcmask 64512
        %v243 = vsel %vm242, %v236, -inf
        %v244 = vsel %vm242, %v239, -inf
        %v245 = vmax.f32 %v243, %v244
        %v246 = vrot.slane %v245, 4
        %v247 = vmax.f32 %v245, %v246
        %v248 = vrot.slane %v247, 2
        %v249 = vmax.f32 %v247, %v248
        %v250 = vrot.slane %v249, 1
        %v251 = vmax.f32 %v249, %v250
        %v252 = vsub.f32 %v236, %v251
        %v253 = vsub.f32 %v239, %v251
        %v254 = vmul.f32 %v252, 1.442695
        %v255 = vpow.pop %v254
        %v256 = vmul.f32 %v253, 1.442695
        %v257 = vpow.pop %v256
        %v258 = vsel %vm242, %v255, 0.0
        %v259 = vsel %vm242, %v257, 0.0
        %v260 = vadd.f32 %v258, %v259
        %v261 = vrot.slane %v260, 4
        %v262 = vadd.f32 %v260, %v261
        %v263 = vrot.slane %v262, 2
        %v264 = vadd.f32 %v262, %v263
        %v265 = vrot.slane %v264, 1
        %v266 = vadd.f32 %v264, %v265
        %v267 = vrcp.pop %v266
        %v268 = vmul.f32 %v255, %v267
        %v269 = vmul.f32 %v257, %v267
        %v270 = vpack.c.bf16 %v269, %v268
        %v271 = vld [vmem:[#allocation2] sm:$0xff]
        %v272 = vld [vmem:[#allocation2 + $0x8] sm:$0xff]
        %v274 = vsel %vm242, %v270, 0
        %vm276 = vcmask 1043456
        %v278 = vsel %vm276, %v200, 0
        %280 = vmatprep.subr.bf16.mxu0 0
        %281 = vmatpush1.bf16.msra.mxu0 0
        %282 = vmatprep.subr.bf16.mxu0 0
        %283 = vmatpush1.bf16.msra.mxu0 0
        %284 = vmatprep.subr.bf16.mxu0 0
        %285 = vmatpush1.bf16.msra.mxu0 0
        %286 = vmatprep.subr.bf16.mxu0 0
        %287 = vmatpush1.bf16.msra.mxu0 0
        %288 = vmatprep.subr.bf16.mxu0 0
        %289 = vmatpush1.bf16.msra.mxu0 0
        %290 = vmatprep.subr.bf16.mxu0 0
        %291 = vmatpush1.bf16.msra.mxu0 0
        %292 = vmatprep.subr.bf16.mxu0 0
        %293 = vmatpush1.bf16.msra.mxu0 0
        %294 = vmatprep.subr.bf16.mxu0 0
        %295 = vmatpush1.bf16.msra.mxu0 %v278
        %296 = vmatprep.subr.bf16.mxu0 0
        %297 = vmatpush2.bf16.msra.mxu0 0
        %298 = vmatprep.subr.bf16.mxu0 0
        %299 = vmatpush2.bf16.msra.mxu0 0
        %300 = vmatprep.subr.bf16.mxu0 0
        %301 = vmatpush2.bf16.msra.mxu0 0
        %302 = vmatprep.subr.bf16.mxu0 0
        %303 = vmatpush2.bf16.msra.mxu0 0
        %304 = vmatprep.subr.bf16.mxu0 0
        %305 = vmatpush2.bf16.msra.mxu0 0
        %306 = vmatprep.subr.bf16.mxu0 0
        %307 = vmatpush2.bf16.msra.mxu0 0
        %308 = vmatprep.subr.bf16.mxu0 0
        %309 = vmatpush2.bf16.msra.mxu0 0
        %310 = vmatprep.subr.bf16.mxu0 0
        %311 = vmatpush2.bf16.msra.mxu0 0
        %312 = vmatprep.mubr.bf16.mxu0 0
        %313 = vmatmul.mubr.bf16.gmra.mxu0 %v274
        %v314 = vpop.f32.mrf.mxu0
        %v315 = vadd.f32 0.0, %v314
        %v316 = vpop.f32.mrf.mxu0
        %v317 = vpop.f32.mrf.mxu0
        %v318 = vadd.f32 0.0, %v317
        %v319 = vpop.f32.mrf.mxu0
        %320 = vdwg.mxu0
        %v321 = vadd.f32 %v271, %v315
        %v322 = vadd.f32 %v272, %v318
        %323 = vst [vmem:[#allocation2] sm:$0xff] %v321
        %324 = vst [vmem:[#allocation2 + $0x8] sm:$0xff] %v322
        %p325 = scmp.eq.s32.totalorder %s28, 1
        // Predicated region
        $region33: #{tpu_custom_call.1} parent=23 // pred_check
          %p326 = pneg %p325
        $region34: #{tpu_custom_call.1} parent=23 // pred_check_branch
          %328 = sbr.rel (%p326) target = $region36
        $region35: #{tpu_custom_call.1} parent=23 // pred_region
          %v329 = vld [vmem:[#allocation2] sm:$0xff]
          %v330 = vld [vmem:[#allocation2 + $0x8] sm:$0xff]
          %v331 = vadd.f32 %v329, %v192
          %v332 = vadd.f32 %v330, %v193
          %333 = vst [vmem:[%s177] sm:$0xff] %v331
          %334 = vst [vmem:[%s177 + $0x8] sm:$0xff] %v332
          %v335 = vadd.f32 %v331, %v332
          %v336 = vrot.slane %v335, 4
          %v337 = vadd.f32 %v335, %v336
          %v338 = vrot.slane %v337, 2
          %v339 = vadd.f32 %v337, %v338
          %v340 = vrot.slane %v339, 1
          %v341 = vadd.f32 %v339, %v340
          %342 = vst [vmem:[%s184] sm:$0x1] %v341
          %v343 = vmul.f32 %v331, %v331
          %v344 = vmul.f32 %v332, %v332
          %v345 = vadd.f32 %v343, %v344
          %v346 = vrot.slane %v345, 4
          %v347 = vadd.f32 %v345, %v346
          %v348 = vrot.slane %v347, 2
          %v349 = vadd.f32 %v347, %v348
          %v350 = vrot.slane %v349, 1
          %v351 = vadd.f32 %v349, %v350
          %352 = vst [vmem:[%s184 + $0x1] sm:$0x1] %v351
        $region36: #{tpu_custom_call.1} parent=23 // pred_fallthru
          _
        %s353 = sand.u32 %s69, 1
        %s354 = scalar_lea.sflag [#allocation5], %s353
        %s355 = sand.u32 %s69, 1
        %s356 = smul.addr %s355, 16
        %s357 = scalar_lea.vmem [#allocation6], %s356
        %s358 = sand.u32 %s95, 1
        %s359 = scalar_lea.sflag [#allocation8], %s358
        %s360 = sand.u32 %s95, 1
        %s361 = smul.addr %s360, 2
        %s362 = scalar_lea.vmem [#allocation7], %s361
        // Predicated region
        $region37: #{tpu_custom_call.1} parent=23 // pred_check
          %p363 = pneg %p79
        $region38: #{tpu_custom_call.1} parent=23 // pred_check_branch
          %365 = sbr.rel (%p363) target = $region40
        $region39: #{tpu_custom_call.1} parent=23 // pred_region
          %s367 = ssub.s32 256, 256
          %368 = vsyncadd %s354, %s367
          %s369 = smul.addr %s27, 2
          %s370 = smul.addr %s369, 128
          %s371 = scalar_lea.hbm %s1, %s370
          %s372 = sshll.u32 %s357, 4
          %s373 = int_to_ptr.vmem [resolvable:$true] %s372
          %378 = dma.vmem_to_hbm [thread:$0]  %s373, 256, %s371, %s354, 128, 128, 8
        $region40: #{tpu_custom_call.1} parent=23 // pred_fallthru
          _
        // Predicated region
        $region41: #{tpu_custom_call.1} parent=23 // pred_check
          %p379 = pneg %p105
        $region42: #{tpu_custom_call.1} parent=23 // pred_check_branch
          %381 = sbr.rel (%p379) target = $region44
        $region43: #{tpu_custom_call.1} parent=23 // pred_region
          %s383 = ssub.s32 32, 32
          %384 = vsyncadd %s359, %s383
          %s385 = smul.addr %s27, 32
          %s386 = scalar_lea.hbm %s2, %s385
          %s388 = sshll.u32 %s362, 4
          %s389 = int_to_ptr.vmem [resolvable:$true] %s388
          %391 = dma.vmem_to_hbm [thread:$0]  %s389, 32, %s386, %s359
        $region44: #{tpu_custom_call.1} parent=23 // pred_fallthru
          _
      $region24: #{tpu_custom_call.1} parent=5 // pred_fallthru
        _
      %p392 = scmp.le.s32.totalorder 2, %s18
      // Predicated region
      $region45: #{tpu_custom_call.1} parent=5 // pred_check
        %p393 = pneg %p392
      $region46: #{tpu_custom_call.1} parent=5 // pred_check_branch
        %395 = sbr.rel (%p393) target = $region48
      $region47: #{tpu_custom_call.1} parent=5 // pred_region
        %s396 = ssub.s32 %s18, 2
        // Predicated region
        $region49: #{tpu_custom_call.1} parent=47 // pred_check
          %p397 = pneg %p85
        $region50: #{tpu_custom_call.1} parent=47 // pred_check_branch
          %399 = sbr.rel (%p397) target = $region52
        $region51: #{tpu_custom_call.1} parent=47 // pred_region
          %s400 = sand.u32 %s70, 1
          %s401 = scalar_lea.sflag [#allocation5], %s400
          %s402 = sand.u32 %s70, 1
          %s403 = smul.addr %s402, 16
          %s404 = scalar_lea.vmem [#allocation6], %s403
          %405 = dma.done %s401, 256
        $region52: #{tpu_custom_call.1} parent=47 // pred_fallthru
          _
        // Predicated region
        $region53: #{tpu_custom_call.1} parent=47 // pred_check
          %p406 = pneg %p111
        $region54: #{tpu_custom_call.1} parent=47 // pred_check_branch
          %408 = sbr.rel (%p406) target = $region56
        $region55: #{tpu_custom_call.1} parent=47 // pred_region
          %s409 = sand.u32 %s96, 1
          %s410 = scalar_lea.sflag [#allocation8], %s409
          %s411 = sand.u32 %s96, 1
          %s412 = smul.addr %s411, 2
          %s413 = scalar_lea.vmem [#allocation7], %s412
          %414 = dma.done %s410, 32
        $region56: #{tpu_custom_call.1} parent=47 // pred_fallthru
          _
      $region48: #{tpu_custom_call.1} parent=5 // pred_fallthru
        _
    $region6: #{tpu_custom_call.1} parent=1 // loop_footer
      %s22 = sadd.s32 1, %s18
    $region7: #{tpu_custom_call.1} parent=1 // loop_footer_branch
      %17 = sbr.rel target = $region3
    $region8: #{tpu_custom_call.1} parent=1 // loop_exit
      _
    %415 = vsyncpa [#allocation4], 1
    %s416 = scalar_lea.sflag [#allocation4], 1
    %417 = vsyncpa %s416, 1
    %418 = vsyncpa [#allocation5], 1
    %s419 = scalar_lea.sflag [#allocation5], 1
    %420 = vsyncpa %s419, 1
    %421 = vsyncpa [#allocation8], 1
    %s422 = scalar_lea.sflag [#allocation8], 1
    %423 = vsyncpa %s422, 1

</llo_original>
